<compile_context>
chip_gen: v5e
topology: v5e:2x2
jax: 0.10.0
libtpu: 0.0.40
codegen_flags: <defaults>
</compile_context>

<pallas_src>
import functools

import jax
import jax.numpy as jnp
from jax.experimental import pallas as pl
from jax.experimental.pallas import tpu as pltpu

_LANE = 128
_SUBLANE = 8


def _mlp_kernel(x_ref, w1_ref, b1_ref, w2_ref, b2_ref, o_ref):
    # Cast activations to bf16 in-register right before the MXU; accumulate f32.
    x = x_ref[...].astype(jnp.bfloat16)
    h = jnp.dot(x, w1_ref[...], preferred_element_type=jnp.float32)
    h = h + b1_ref[...]
    # LeakyReLU(0.2): one vmul + one vmax (cheaper than cmp + select).
    h = jnp.maximum(h, 0.2 * h)
    # dot #2: bf16 operands, f32 accumulation.
    y = jnp.dot(h.astype(jnp.bfloat16), w2_ref[...],
                preferred_element_type=jnp.float32)
    y = y + b2_ref[...]
    # Sigmoid: exp on the EUP, approx reciprocal also on the EUP (frees VALU slots).
    o_ref[...] = pl.reciprocal(1.0 + jnp.exp(-y), approx=True).astype(o_ref.dtype)


def _round_up(n, m):
    return ((n + m - 1) // m) * m


@functools.partial(jax.jit, static_argnames=("block_b",))
def feature_level_D_ce_forward(x, w1, b1, w2, b2, *, block_b=1024):
    """x: (B, input_size) f32 -> (B, num_class) f32."""
    B, D_in = x.shape
    M = w1.shape[1]
    C = w2.shape[1]

    # Lane-pad the hidden and output feature dims to multiples of 128.
    M_p = _round_up(M, _LANE)
    C_p = _round_up(C, _LANE)

    # Batch tile: multiple of 8 sublanes, capped at block_b rows.
    tb = min(block_b, _round_up(B, _SUBLANE))
    B_p = _round_up(B, tb)

    # x stays f32 (kernel casts to bf16) -> no extra HBM cast pass.
    # Only materialize a padded copy if the batch isn't already tile-aligned.
    x_p = x if B_p == B else jnp.zeros((B_p, D_in), x.dtype).at[:B].set(x)

    # Weights are tiny: pad feature dims to 128 lanes, cast matmul operands to
    # bf16 once here; biases stay f32 for the VPU-side epilogue.
    w1_p = jnp.zeros((D_in, M_p), jnp.bfloat16).at[:, :M].set(w1.astype(jnp.bfloat16))
    w2_p = jnp.zeros((M_p, C_p), jnp.bfloat16).at[:M, :C].set(w2.astype(jnp.bfloat16))
    b1_p = jnp.zeros((1, M_p), jnp.float32).at[0, :M].set(b1.astype(jnp.float32))
    b2_p = jnp.zeros((1, C_p), jnp.float32).at[0, :C].set(b2.astype(jnp.float32))

    grid = (B_p // tb,)

    out_p = pl.pallas_call(
        _mlp_kernel,
        out_shape=jax.ShapeDtypeStruct((B_p, C_p), jnp.float32),
        grid_spec=pltpu.PrefetchScalarGridSpec(
            num_scalar_prefetch=0,
            grid=grid,
            in_specs=[
                pl.BlockSpec((tb, D_in), lambda i: (i, 0)),   # x tile marches over batch
                pl.BlockSpec((D_in, M_p), lambda i: (0, 0)),  # weights resident across steps
                pl.BlockSpec((1, M_p), lambda i: (0, 0)),
                pl.BlockSpec((M_p, C_p), lambda i: (0, 0)),
                pl.BlockSpec((1, C_p), lambda i: (0, 0)),
            ],
            out_specs=pl.BlockSpec((tb, C_p), lambda i: (i, 0)),
        ),
        compiler_params=pltpu.CompilerParams(
            dimension_semantics=("parallel",),  # batch axis: megacore-shardable on v7x
        ),
    )(x_p, w1_p, b1_p, w2_p, b2_p)

    # Strip batch + lane padding.
    return out_p[:B, :C]


def init_params(key, input_size=384, middle_size=99, num_class=100):
    """Deterministic init mimicking torch.nn.Linear default (U[-1/sqrt(fan_in), +1/sqrt(fan_in)])."""
    k1, k2, k3, k4 = jax.random.split(key, 4)
    bound1 = 1.0 / (input_size ** 0.5)
    bound2 = 1.0 / (middle_size ** 0.5)
    w1 = jax.random.uniform(k1, (input_size, middle_size), jnp.float32, -bound1, bound1)
    b1 = jax.random.uniform(k2, (middle_size,), jnp.float32, -bound1, bound1)
    w2 = jax.random.uniform(k3, (middle_size, num_class), jnp.float32, -bound2, bound2)
    b2 = jax.random.uniform(k4, (num_class,), jnp.float32, -bound2, bound2)
    return w1, b1, w2, b2


if __name__ == "__main__":
    # Small but module-consistent shapes.
    B = 4
    input_size, middle_size, num_class = 384, 99, 100

    key = jax.random.PRNGKey(0)
    kx, kp = jax.random.split(key)
    x = jax.random.normal(kx, (B, input_size), jnp.float32)
    w1, b1, w2, b2 = init_params(kp, input_size, middle_size, num_class)

    out = feature_level_D_ce_forward(x, w1, b1, w2, b2)
    out = jax.block_until_ready(out)

    # Sanity check against pure-JAX f32 reference (tolerance loosened for
    # bf16 matmul operands + EUP approx reciprocal).
    h_ref = x @ w1 + b1
    h_ref = jnp.where(h_ref >= 0, h_ref, 0.2 * h_ref)
    ref = jax.nn.sigmoid(h_ref @ w2 + b2)
    assert out.shape == (B, num_class)
    assert jnp.allclose(out, ref, atol=2e-2, rtol=2e-2), (
        float(jnp.max(jnp.abs(out - ref))))

    print("KERNEL_OK")
</pallas_src>

<mosaic_0001>
module attributes {stable_mosaic.version = 11 : i64} {
  func.func @_mlp_kernel(%arg0: i32, %arg1: memref<8x384xf32, #tpu.memory_space<vmem>>, %arg2: memref<384x128xbf16, #tpu.memory_space<vmem>>, %arg3: memref<1x128xf32, #tpu.memory_space<vmem>>, %arg4: memref<128x128xbf16, #tpu.memory_space<vmem>>, %arg5: memref<1x128xf32, #tpu.memory_space<vmem>>, %arg6: memref<8x128xf32, #tpu.memory_space<vmem>>) attributes {dimension_semantics = [#tpu.dimension_semantics<parallel>], iteration_bounds = array<i64: 1>, scalar_prefetch = 0 : i64, scratch_operands = 0 : i64, tpu.core_type = #tpu.core_type<tc>, window_params = [{transform_indices = @transform_0, window_bounds = array<i64: 8, 384>}, {pipeline_mode = #tpu.pipeline_mode<synchronous>, transform_indices = @transform_1, window_bounds = array<i64: 384, 128>}, {pipeline_mode = #tpu.pipeline_mode<synchronous>, transform_indices = @transform_2, window_bounds = array<i64: 1, 128>}, {pipeline_mode = #tpu.pipeline_mode<synchronous>, transform_indices = @transform_3, window_bounds = array<i64: 128, 128>}, {pipeline_mode = #tpu.pipeline_mode<synchronous>, transform_indices = @transform_4, window_bounds = array<i64: 1, 128>}, {transform_indices = @transform_5, window_bounds = array<i64: 8, 128>}]} {
    %c0 = arith.constant 0 : index
    %c0_0 = arith.constant 0 : index
    %0 = vector.load %arg1[%c0, %c0_0] : memref<8x384xf32, #tpu.memory_space<vmem>>, vector<8x384xf32>
    %1 = arith.truncf %0 : vector<8x384xf32> to vector<8x384xbf16>
    %c0_1 = arith.constant 0 : index
    %c0_2 = arith.constant 0 : index
    %2 = vector.load %arg2[%c0_1, %c0_2] : memref<384x128xbf16, #tpu.memory_space<vmem>>, vector<384x128xbf16>
    %cst = arith.constant dense<0.000000e+00> : vector<8x128xf32>
    %3 = tpu.matmul %1, %2, %cst {dimension_numbers = #tpu.dot_dimension_numbers<[1], [0], [0], [1], [0, 0, 1, 1], [], []>} : vector<8x384xbf16>, vector<384x128xbf16>, vector<8x128xf32> -> vector<8x128xf32>
    %c0_3 = arith.constant 0 : index
    %c0_4 = arith.constant 0 : index
    %4 = vector.load %arg3[%c0_3, %c0_4] : memref<1x128xf32, #tpu.memory_space<vmem>>, vector<1x128xf32>
    %5 = vector.broadcast %4 : vector<1x128xf32> to vector<8x128xf32>
    %6 = arith.addf %3, %5 : vector<8x128xf32>
    %cst_5 = arith.constant 2.000000e-01 : f32
    %7 = vector.broadcast %cst_5 : f32 to vector<8x128xf32>
    %8 = arith.mulf %7, %6 : vector<8x128xf32>
    %9 = arith.maximumf %6, %8 : vector<8x128xf32>
    %10 = arith.truncf %9 : vector<8x128xf32> to vector<8x128xbf16>
    %c0_6 = arith.constant 0 : index
    %c0_7 = arith.constant 0 : index
    %11 = vector.load %arg4[%c0_6, %c0_7] : memref<128x128xbf16, #tpu.memory_space<vmem>>, vector<128x128xbf16>
    %cst_8 = arith.constant dense<0.000000e+00> : vector<8x128xf32>
    %12 = tpu.matmul %10, %11, %cst_8 {dimension_numbers = #tpu.dot_dimension_numbers<[1], [0], [0], [1], [0, 0, 1, 1], [], []>} : vector<8x128xbf16>, vector<128x128xbf16>, vector<8x128xf32> -> vector<8x128xf32>
    %c0_9 = arith.constant 0 : index
    %c0_10 = arith.constant 0 : index
    %13 = vector.load %arg5[%c0_9, %c0_10] : memref<1x128xf32, #tpu.memory_space<vmem>>, vector<1x128xf32>
    %14 = vector.broadcast %13 : vector<1x128xf32> to vector<8x128xf32>
    %15 = arith.addf %12, %14 : vector<8x128xf32>
    %cst_11 = arith.constant 0.000000e+00 : f32
    %16 = vector.broadcast %cst_11 : f32 to vector<8x128xf32>
    %17 = arith.subf %16, %15 : vector<8x128xf32>
    %18 = math.exp %17 : vector<8x128xf32>
    %cst_12 = arith.constant 1.000000e+00 : f32
    %19 = vector.broadcast %cst_12 : f32 to vector<8x128xf32>
    %20 = arith.addf %19, %18 : vector<8x128xf32>
    %21 = tpu.reciprocal %20 {approx = true} : vector<8x128xf32> -> vector<8x128xf32>
    %c0_13 = arith.constant 0 : index
    %c0_14 = arith.constant 0 : index
    %22 = vector.load %arg6[%c0_13, %c0_14] : memref<8x128xf32, #tpu.memory_space<vmem>>, vector<8x128xf32>
    tpu.vector_store %arg6[%c0_13, %c0_14], %21 {strides = array<i32>} : memref<8x128xf32, #tpu.memory_space<vmem>>, vector<8x128xf32>,
    return
  }
  func.func @transform_0(%arg0: i32) -> (i32, i32) {
    %c0_i32 = arith.constant 0 : i32
    %c0_i32_0 = arith.constant 0 : i32
    return %arg0, %c0_i32 : i32, i32
  }
  func.func @transform_1(%arg0: i32) -> (i32, i32) {
    %c0_i32 = arith.constant 0 : i32
    %c0_i32_0 = arith.constant 0 : i32
    %c0_i32_1 = arith.constant 0 : i32
    return %c0_i32, %c0_i32_0 : i32, i32
  }
  func.func @transform_2(%arg0: i32) -> (i32, i32) {
    %c0_i32 = arith.constant 0 : i32
    %c0_i32_0 = arith.constant 0 : i32
    %c0_i32_1 = arith.constant 0 : i32
    return %c0_i32, %c0_i32_0 : i32, i32
  }
  func.func @transform_3(%arg0: i32) -> (i32, i32) {
    %c0_i32 = arith.constant 0 : i32
    %c0_i32_0 = arith.constant 0 : i32
    %c0_i32_1 = arith.constant 0 : i32
    return %c0_i32, %c0_i32_0 : i32, i32
  }
  func.func @transform_4(%arg0: i32) -> (i32, i32) {
    %c0_i32 = arith.constant 0 : i32
    %c0_i32_0 = arith.constant 0 : i32
    %c0_i32_1 = arith.constant 0 : i32
    return %c0_i32, %c0_i32_0 : i32, i32
  }
  func.func @transform_5(%arg0: i32) -> (i32, i32) {
    %c0_i32 = arith.constant 0 : i32
    %c0_i32_0 = arith.constant 0 : i32
    return %arg0, %c0_i32 : i32, i32
  }
}

</mosaic_0001>

<llo_original>
// kernel: feature_level_D_ce_forward.1
$region0: #{feature_level_D_ce_forward.1}
  #allocation0 [shape = 'u32[]', space=smem, size = 0x4, offset = 0x4, fixed_abs, tag = 'smem constant byte address 0x4 - core index']
  #allocation1 [shape = 'u32[72,128]{1,0:T(1,128)}', space=vmem, size = 0x9000, scoped, tag = 'internal scratch']
  %s0 = inlined_call_operand.vmem [shape: f32[8,384], index: 0, kind: input, shape index: {}]
  %s1 = inlined_call_operand.vmem [shape: bf16[384,128], index: 1, kind: input, shape index: {}]
  %s2 = inlined_call_operand.vmem [shape: f32[1,128], index: 2, kind: input, shape index: {}]
  %s3 = inlined_call_operand.vmem [shape: bf16[128,128], index: 3, kind: input, shape index: {}]
  %s4 = inlined_call_operand.vmem [shape: f32[1,128], index: 4, kind: input, shape index: {}]
  %s5 = inlined_call_operand.vmem [shape: f32[8,128], index: 5, kind: output, shape index: {}]
  %s6 = sld [smem:[#allocation0]]
  $region30: #{feature_level_D_ce_forward.1} parent=0
    _
  %s8 = ssub.s32 1, %s6
  %s9 = scalar_select 0, %s8, %s6
  // Predicated region
  $region2: #{feature_level_D_ce_forward.1} parent=0 // pred_check
    _
  $region3: #{feature_level_D_ce_forward.1} parent=0 // pred_check_branch
    %11 = sbr.rel (0) target = $region5
  $region4: #{feature_level_D_ce_forward.1} parent=0 // pred_region
    _
  $region5: #{feature_level_D_ce_forward.1} parent=0 // pred_fallthru
    _
  // Predicated region
  $region6: #{feature_level_D_ce_forward.1} parent=0 // pred_check
    _
  $region7: #{feature_level_D_ce_forward.1} parent=0 // pred_check_branch
    %13 = sbr.rel (0) target = $region9
  $region8: #{feature_level_D_ce_forward.1} parent=0 // pred_region
    _
  $region9: #{feature_level_D_ce_forward.1} parent=0 // pred_fallthru
    _
  // Predicated region
  $region10: #{feature_level_D_ce_forward.1} parent=0 // pred_check
    _
  $region11: #{feature_level_D_ce_forward.1} parent=0 // pred_check_branch
    %15 = sbr.rel (0) target = $region13
  $region12: #{feature_level_D_ce_forward.1} parent=0 // pred_region
    _
  $region13: #{feature_level_D_ce_forward.1} parent=0 // pred_fallthru
    _
  // Predicated region
  $region14: #{feature_level_D_ce_forward.1} parent=0 // pred_check
    _
  $region15: #{feature_level_D_ce_forward.1} parent=0 // pred_check_branch
    %17 = sbr.rel (0) target = $region17
  $region16: #{feature_level_D_ce_forward.1} parent=0 // pred_region
    _
  $region17: #{feature_level_D_ce_forward.1} parent=0 // pred_fallthru
    _
  // Predicated region
  $region18: #{feature_level_D_ce_forward.1} parent=0 // pred_check
    _
  $region19: #{feature_level_D_ce_forward.1} parent=0 // pred_check_branch
    %19 = sbr.rel (0) target = $region21
  $region20: #{feature_level_D_ce_forward.1} parent=0 // pred_region
    _
  $region21: #{feature_level_D_ce_forward.1} parent=0 // pred_fallthru
    _
  %v20 = vld [vmem:[%s0] sm:$0xff]
  %v21 = vld [vmem:[%s0 + $0x8] sm:$0xff]
  %v22 = vld [vmem:[%s0 + $0x10] sm:$0xff]
  %v23 = vpack.c.bf16 %v20, %v20
  %v24 = vpack.c.bf16 %v21, %v21
  %v25 = vpack.c.bf16 %v22, %v22
  %v26 = vld [vmem:[%s1] sm:$0xf]
  %v27 = vld [vmem:[%s1 + $0x4] sm:$0xf]
  %v28 = vld [vmem:[%s1 + $0x8] sm:$0xf]
  %v29 = vld [vmem:[%s1 + $0xc] sm:$0xf]
  %v30 = vld [vmem:[%s1 + $0x10] sm:$0xf]
  %v31 = vld [vmem:[%s1 + $0x14] sm:$0xf]
  %v32 = vld [vmem:[%s1 + $0x18] sm:$0xf]
  %v33 = vld [vmem:[%s1 + $0x1c] sm:$0xf]
  %v34 = vld [vmem:[%s1 + $0x20] sm:$0xf]
  %v35 = vld [vmem:[%s1 + $0x24] sm:$0xf]
  %v36 = vld [vmem:[%s1 + $0x28] sm:$0xf]
  %v37 = vld [vmem:[%s1 + $0x2c] sm:$0xf]
  %v38 = vld [vmem:[%s1 + $0x30] sm:$0xf]
  %v39 = vld [vmem:[%s1 + $0x34] sm:$0xf]
  %v40 = vld [vmem:[%s1 + $0x38] sm:$0xf]
  %v41 = vld [vmem:[%s1 + $0x3c] sm:$0xf]
  %v42 = vld [vmem:[%s1 + $0x40] sm:$0xf]
  %v43 = vld [vmem:[%s1 + $0x44] sm:$0xf]
  %v44 = vld [vmem:[%s1 + $0x48] sm:$0xf]
  %v45 = vld [vmem:[%s1 + $0x4c] sm:$0xf]
  %v46 = vld [vmem:[%s1 + $0x50] sm:$0xf]
  %v47 = vld [vmem:[%s1 + $0x54] sm:$0xf]
  %v48 = vld [vmem:[%s1 + $0x58] sm:$0xf]
  %v49 = vld [vmem:[%s1 + $0x5c] sm:$0xf]
  %v50 = vld [vmem:[%s1 + $0x60] sm:$0xf]
  %v51 = vld [vmem:[%s1 + $0x64] sm:$0xf]
  %v52 = vld [vmem:[%s1 + $0x68] sm:$0xf]
  %v53 = vld [vmem:[%s1 + $0x6c] sm:$0xf]
  %v54 = vld [vmem:[%s1 + $0x70] sm:$0xf]
  %v55 = vld [vmem:[%s1 + $0x74] sm:$0xf]
  %v56 = vld [vmem:[%s1 + $0x78] sm:$0xf]
  %v57 = vld [vmem:[%s1 + $0x7c] sm:$0xf]
  %v58 = vld [vmem:[%s1 + $0x80] sm:$0xf]
  %v59 = vld [vmem:[%s1 + $0x84] sm:$0xf]
  %v60 = vld [vmem:[%s1 + $0x88] sm:$0xf]
  %v61 = vld [vmem:[%s1 + $0x8c] sm:$0xf]
  %v62 = vld [vmem:[%s1 + $0x90] sm:$0xf]
  %v63 = vld [vmem:[%s1 + $0x94] sm:$0xf]
  %v64 = vld [vmem:[%s1 + $0x98] sm:$0xf]
  %v65 = vld [vmem:[%s1 + $0x9c] sm:$0xf]
  %v66 = vld [vmem:[%s1 + $0xa0] sm:$0xf]
  %v67 = vld [vmem:[%s1 + $0xa4] sm:$0xf]
  %v68 = vld [vmem:[%s1 + $0xa8] sm:$0xf]
  %v69 = vld [vmem:[%s1 + $0xac] sm:$0xf]
  %v70 = vld [vmem:[%s1 + $0xb0] sm:$0xf]
  %v71 = vld [vmem:[%s1 + $0xb4] sm:$0xf]
  %v72 = vld [vmem:[%s1 + $0xb8] sm:$0xf]
  %v73 = vld [vmem:[%s1 + $0xbc] sm:$0xf]
  %v74 = vld [vmem:[%s2] sm:$0x1]
  %v76 = vperm.slane %v74, 0
  %v126 = vunpack.c.l.b16 %v26
  %v127 = vunpack.c.l.b16 %v27
  %v128 = vunpack.c.l.b16 %v28
  %v129 = vunpack.c.l.b16 %v29
  %v130 = vunpack.c.l.b16 %v30
  %v131 = vunpack.c.l.b16 %v31
  %v132 = vunpack.c.l.b16 %v32
  %v133 = vunpack.c.l.b16 %v33
  %v134 = vunpack.c.l.b16 %v34
  %v135 = vunpack.c.l.b16 %v35
  %v136 = vunpack.c.l.b16 %v36
  %v137 = vunpack.c.l.b16 %v37
  %v138 = vunpack.c.l.b16 %v38
  %v139 = vunpack.c.l.b16 %v39
  %v140 = vunpack.c.l.b16 %v40
  %v141 = vunpack.c.l.b16 %v41
  %v142 = vunpack.c.l.b16 %v42
  %v143 = vunpack.c.l.b16 %v43
  %v144 = vunpack.c.l.b16 %v44
  %v145 = vunpack.c.l.b16 %v45
  %v146 = vunpack.c.l.b16 %v46
  %v147 = vunpack.c.l.b16 %v47
  %v148 = vunpack.c.l.b16 %v48
  %v149 = vunpack.c.l.b16 %v49
  %v150 = vunpack.c.l.b16 %v50
  %v151 = vunpack.c.l.b16 %v51
  %v152 = vunpack.c.l.b16 %v52
  %v153 = vunpack.c.l.b16 %v53
  %v154 = vunpack.c.l.b16 %v54
  %v155 = vunpack.c.l.b16 %v55
  %v156 = vunpack.c.l.b16 %v56
  %v157 = vunpack.c.l.b16 %v57
  %v158 = vunpack.c.l.b16 %v58
  %v159 = vunpack.c.l.b16 %v59
  %v160 = vunpack.c.l.b16 %v60
  %v161 = vunpack.c.l.b16 %v61
  %v162 = vunpack.c.l.b16 %v62
  %v163 = vunpack.c.l.b16 %v63
  %v164 = vunpack.c.l.b16 %v64
  %v165 = vunpack.c.l.b16 %v65
  %v166 = vunpack.c.l.b16 %v66
  %v167 = vunpack.c.l.b16 %v67
  %v168 = vunpack.c.l.b16 %v68
  %v169 = vunpack.c.l.b16 %v69
  %v170 = vunpack.c.l.b16 %v70
  %v171 = vunpack.c.l.b16 %v71
  %v172 = vunpack.c.l.b16 %v72
  %v173 = vunpack.c.l.b16 %v73
  %v174 = vpack.c.b16 %v127, %v126
  %v175 = vpack.c.b16 %v129, %v128
  %v176 = vpack.c.b16 %v131, %v130
  %v177 = vpack.c.b16 %v133, %v132
  %v178 = vpack.c.b16 %v135, %v134
  %v179 = vpack.c.b16 %v137, %v136
  %v180 = vpack.c.b16 %v139, %v138
  %v181 = vpack.c.b16 %v141, %v140
  %v182 = vpack.c.b16 %v143, %v142
  %v183 = vpack.c.b16 %v145, %v144
  %v184 = vpack.c.b16 %v147, %v146
  %v185 = vpack.c.b16 %v149, %v148
  %v186 = vpack.c.b16 %v151, %v150
  %v187 = vpack.c.b16 %v153, %v152
  %v188 = vpack.c.b16 %v155, %v154
  %v189 = vpack.c.b16 %v157, %v156
  %v190 = vpack.c.b16 %v159, %v158
  %v191 = vpack.c.b16 %v161, %v160
  %v192 = vpack.c.b16 %v163, %v162
  %v193 = vpack.c.b16 %v165, %v164
  %v194 = vpack.c.b16 %v167, %v166
  %v195 = vpack.c.b16 %v169, %v168
  %v196 = vpack.c.b16 %v171, %v170
  %v197 = vpack.c.b16 %v173, %v172
  %222 = vmatpush.bf16.msra.mxu0 %v181
  %223 = vmatpush.bf16.msra.mxu0 %v180
  %224 = vmatpush.bf16.msra.mxu0 %v179
  %225 = vmatpush.bf16.msra.mxu0 %v178
  %226 = vmatpush.bf16.msra.mxu0 %v177
  %227 = vmatpush.bf16.msra.mxu0 %v176
  %228 = vmatpush.bf16.msra.mxu0 %v175
  %229 = vmatpush.bf16.msra.mxu0 %v174
  %230 = vmatmul.bf16.gmra.mxu0 %v23
  %v231 = vpop.f32.mrf.mxu0
  %v232 = vadd.f32 %v76, %v231
  %v233 = vpop.f32.mrf.mxu0
  %234 = vdwg.mxu0
  %235 = vmatpush.bf16.msra.mxu0 %v189
  %236 = vmatpush.bf16.msra.mxu0 %v188
  %237 = vmatpush.bf16.msra.mxu0 %v187
  %238 = vmatpush.bf16.msra.mxu0 %v186
  %239 = vmatpush.bf16.msra.mxu0 %v185
  %240 = vmatpush.bf16.msra.mxu0 %v184
  %241 = vmatpush.bf16.msra.mxu0 %v183
  %242 = vmatpush.bf16.msra.mxu0 %v182
  %243 = vmatmul.bf16.gmra.mxu0 %v24
  %v244 = vpop.f32.mrf.mxu0
  %v245 = vadd.f32 %v232, %v244
  %v246 = vpop.f32.mrf.mxu0
  %247 = vdwg.mxu0
  %248 = vmatpush.bf16.msra.mxu0 %v197
  %249 = vmatpush.bf16.msra.mxu0 %v196
  %250 = vmatpush.bf16.msra.mxu0 %v195
  %251 = vmatpush.bf16.msra.mxu0 %v194
  %252 = vmatpush.bf16.msra.mxu0 %v193
  %253 = vmatpush.bf16.msra.mxu0 %v192
  %254 = vmatpush.bf16.msra.mxu0 %v191
  %255 = vmatpush.bf16.msra.mxu0 %v190
  %256 = vmatmul.bf16.gmra.mxu0 %v25
  %v257 = vpop.f32.mrf.mxu0
  %v258 = vadd.f32 %v245, %v257
  %v259 = vpop.f32.mrf.mxu0
  %260 = vdwg.mxu0
  %v261 = vmul.f32 %v258, 0.2
  %v262 = vmax.f32 %v258, %v261
  %v263 = vpack.c.bf16 %v262, %v262
  %v264 = vld [vmem:[%s3] sm:$0xf]
  %v265 = vld [vmem:[%s3 + $0x4] sm:$0xf]
  %v266 = vld [vmem:[%s3 + $0x8] sm:$0xf]
  %v267 = vld [vmem:[%s3 + $0xc] sm:$0xf]
  %v268 = vld [vmem:[%s3 + $0x10] sm:$0xf]
  %v269 = vld [vmem:[%s3 + $0x14] sm:$0xf]
  %v270 = vld [vmem:[%s3 + $0x18] sm:$0xf]
  %v271 = vld [vmem:[%s3 + $0x1c] sm:$0xf]
  %v272 = vld [vmem:[%s3 + $0x20] sm:$0xf]
  %v273 = vld [vmem:[%s3 + $0x24] sm:$0xf]
  %v274 = vld [vmem:[%s3 + $0x28] sm:$0xf]
  %v275 = vld [vmem:[%s3 + $0x2c] sm:$0xf]
  %v276 = vld [vmem:[%s3 + $0x30] sm:$0xf]
  %v277 = vld [vmem:[%s3 + $0x34] sm:$0xf]
  %v278 = vld [vmem:[%s3 + $0x38] sm:$0xf]
  %v279 = vld [vmem:[%s3 + $0x3c] sm:$0xf]
  %v280 = vld [vmem:[%s4] sm:$0x1]
  %v282 = vperm.slane %v280, 0
  %v300 = vunpack.c.l.b16 %v264
  %v301 = vunpack.c.l.b16 %v265
  %v302 = vunpack.c.l.b16 %v266
  %v303 = vunpack.c.l.b16 %v267
  %v304 = vunpack.c.l.b16 %v268
  %v305 = vunpack.c.l.b16 %v269
  %v306 = vunpack.c.l.b16 %v270
  %v307 = vunpack.c.l.b16 %v271
  %v308 = vunpack.c.l.b16 %v272
  %v309 = vunpack.c.l.b16 %v273
  %v310 = vunpack.c.l.b16 %v274
  %v311 = vunpack.c.l.b16 %v275
  %v312 = vunpack.c.l.b16 %v276
  %v313 = vunpack.c.l.b16 %v277
  %v314 = vunpack.c.l.b16 %v278
  %v315 = vunpack.c.l.b16 %v279
  %v316 = vpack.c.b16 %v301, %v300
  %v317 = vpack.c.b16 %v303, %v302
  %v318 = vpack.c.b16 %v305, %v304
  %v319 = vpack.c.b16 %v307, %v306
  %v320 = vpack.c.b16 %v309, %v308
  %v321 = vpack.c.b16 %v311, %v310
  %v322 = vpack.c.b16 %v313, %v312
  %v323 = vpack.c.b16 %v315, %v314
  %332 = vmatpush.bf16.msra.mxu0 %v323
  %333 = vmatpush.bf16.msra.mxu0 %v322
  %334 = vmatpush.bf16.msra.mxu0 %v321
  %335 = vmatpush.bf16.msra.mxu0 %v320
  %336 = vmatpush.bf16.msra.mxu0 %v319
  %337 = vmatpush.bf16.msra.mxu0 %v318
  %338 = vmatpush.bf16.msra.mxu0 %v317
  %339 = vmatpush.bf16.msra.mxu0 %v316
  %340 = vmatmul.bf16.gmra.mxu0 %v263
  %v341 = vpop.f32.mrf.mxu0
  %v342 = vadd.f32 %v282, %v341
  %v343 = vpop.f32.mrf.mxu0
  %344 = vdwg.mxu0
  %v345 = vsub.f32 0.0, %v342
  %v346 = vmul.f32 %v345, 1.442695
  %v347 = vpow.pop %v346
  %v348 = vadd.f32 %v347, 1.0
  %v349 = vrcp.pop %v348
  %350 = vst [vmem:[%s5] sm:$0xff] %v349
  // Predicated region
  $region22: #{feature_level_D_ce_forward.1} parent=0 // pred_check
    _
  $region23: #{feature_level_D_ce_forward.1} parent=0 // pred_check_branch
    %352 = sbr.rel (0) target = $region25
  $region24: #{feature_level_D_ce_forward.1} parent=0 // pred_region
    _
  $region25: #{feature_level_D_ce_forward.1} parent=0 // pred_fallthru
    _
  // Predicated region
  $region26: #{feature_level_D_ce_forward.1} parent=0 // pred_check
    _
  $region27: #{feature_level_D_ce_forward.1} parent=0 // pred_check_branch
    %354 = sbr.rel (0) target = $region29
  $region28: #{feature_level_D_ce_forward.1} parent=0 // pred_region
    _
  $region29: #{feature_level_D_ce_forward.1} parent=0 // pred_fallthru
    _

</llo_original>
